<compile_context>
chip_gen: v5e
topology: v5e:2x2
jax: 0.10.0
libtpu: 0.0.40
codegen_flags: <defaults>
</compile_context>

<pallas_src>
import functools
import math

import jax
import jax.numpy as jnp
from jax import lax
from jax.experimental import pallas as pl
from jax.experimental.pallas import tpu as pltpu


def _attnpool_kernel(x_ref, x0_ref, wq_ref, bq_ref, wkv_ref, bkv_ref,
                     wc_ref, bc_ref, qexp_ref, hmask_ref, bias_ref, hcomb_ref,
                     o_ref, *, num_heads: int):
    """One batch tile: Bt batch elements, L tokens each, flattened to Bt*L rows."""
    x = x_ref[0]                                    # (Bt*L, E) all tokens of the tile
    x0 = x0_ref[0]                                  # (Bt, E)   query token per batch
    E = x.shape[-1]
    head_dim = E // num_heads
    scale = 1.0 / math.sqrt(head_dim)

    # Fused K/V projection: one MXU matmul over every token in the tile.
    kv = jnp.dot(x, wkv_ref[...], preferred_element_type=jnp.float32) + bkv_ref[...]
    k = kv[:, :E]                                   # (Bt*L, E)
    v = kv[:, E:]                                   # (Bt*L, E)

    # Query projection only for sequence position 0 (the module consumes x[0]).
    q = jnp.dot(x0, wq_ref[...], preferred_element_type=jnp.float32) + bq_ref[...]
    q = q * scale                                   # (Bt, E)

    # Head-block-diagonal query rows: row (b, h) carries q[b] restricted to
    # head h's channel slice (no reshape, no per-head loop).
    qbd = jnp.dot(qexp_ref[...], q, preferred_element_type=jnp.float32)   # (Bt*H, E)
    qbd = qbd * hmask_ref[...]

    # Scores: contract both operands over the embedding axis ("NT" matmul,
    # same dimension_numbers the reference TPU flash-attention kernel uses).
    s = lax.dot_general(qbd, k, (((1,), (1,)), ((), ())),
                        preferred_element_type=jnp.float32)               # (Bt*H, Bt*L)
    s = s + bias_ref[...]          # -1e30 where query-batch != key-batch

    # Softmax over keys (lane axis); EUP approximate reciprocal normalizer.
    s = s - jnp.max(s, axis=-1, keepdims=True)
    p = jnp.exp(s)
    p = p * pl.reciprocal(jnp.sum(p, axis=-1, keepdims=True), approx=True)

    # Weighted values; take each channel from its own head and fold the head
    # rows back to one row per batch element (replaces the old concat).
    pv = jnp.dot(p, v, preferred_element_type=jnp.float32)                # (Bt*H, E)
    attn = jnp.dot(hcomb_ref[...], hmask_ref[...] * pv,
                   preferred_element_type=jnp.float32)                    # (Bt, E)

    # Output projection (only Bt rows, not Bt*L).
    out = jnp.dot(attn, wc_ref[...], preferred_element_type=jnp.float32) + bc_ref[...]
    o_ref[0] = out.astype(o_ref.dtype)              # (Bt, O)


def _pick_batch_tile(n: int, cap: int = 8) -> int:
    for bt in range(min(n, cap), 0, -1):
        if n % bt == 0:
            return bt
    return 1


def attention_pool_2d(x, params, num_heads, batch_tile=None):
    """x: (N, C, H, W) float32.  Returns (N, output_dim)."""
    N, C, H, W = x.shape
    E = C
    pos_emb = params["pos_emb"]                     # (H*W + 1, E)
    O = params["wc"].shape[0]

    # ---- glue (plain JAX): build the token sequence -------------------------
    seq = x.reshape(N, C, H * W).transpose(2, 0, 1)                        # (HW, N, C)
    seq = jnp.concatenate([seq.mean(axis=0, keepdims=True), seq], axis=0)  # (L, N, C)
    seq = seq + pos_emb[:, None, :]
    L = seq.shape[0]
    seq = seq.transpose(1, 0, 2)                                           # (N, L, E)

    # Batch tiling: Bt batch elements per grid step; the tile is flattened in
    # the wrapper so the kernel only ever sees 2-D operands (no in-kernel
    # reshape / relayout).
    Bt = batch_tile if batch_tile is not None else _pick_batch_tile(N)
    assert N % Bt == 0, "batch_tile must divide the batch size"
    G = N // Bt
    NH = Bt * num_heads
    tokens = seq.reshape(G, Bt * L, E)              # per-tile token slab
    x0 = seq[:, 0, :].reshape(G, Bt, E)             # per-tile query tokens

    # Weights pre-transposed (free XLA layout plumbing); K/V weights fused.
    wq_t = params["wq"].T                                               # (E, E)
    wkv_t = jnp.concatenate([params["wk"], params["wv"]], axis=0).T     # (E, 2E)
    wc_t = params["wc"].T                                               # (E, O)
    bq = params["bq"].reshape(1, E)
    bkv = jnp.concatenate([params["bk"], params["bv"]]).reshape(1, 2 * E)
    bc = params["bc"].reshape(1, O)

    # Tiny structure matrices (constant across the grid, built once in XLA).
    Dh = E // num_heads
    row_head = jnp.arange(NH) % num_heads           # head id of each (b, h) row
    row_batch = jnp.arange(NH) // num_heads         # batch id of each (b, h) row
    col_head = jnp.arange(E) // Dh                  # head id of each channel
    tok_batch = jnp.arange(Bt * L) // L             # batch id of each token row
    head_mask = (row_head[:, None] == col_head[None, :]).astype(jnp.float32)       # (Bt*H, E)
    q_expand = (row_batch[:, None] == jnp.arange(Bt)[None, :]).astype(jnp.float32)  # (Bt*H, Bt)
    head_combine = q_expand.T                                                       # (Bt, Bt*H)
    neg_bias = jnp.where(row_batch[:, None] == tok_batch[None, :],
                         0.0, -1e30).astype(jnp.float32)                            # (Bt*H, Bt*L)

    kernel = functools.partial(_attnpool_kernel, num_heads=num_heads)
    const2d = lambda g: (0, 0)

    out = pl.pallas_call(
        kernel,
        out_shape=jax.ShapeDtypeStruct((G, Bt, O), jnp.float32),
        grid_spec=pltpu.PrefetchScalarGridSpec(
            num_scalar_prefetch=0,
            grid=(G,),
            in_specs=[
                pl.BlockSpec((1, Bt * L, E), lambda g: (g, 0, 0)),   # token slab
                pl.BlockSpec((1, Bt, E), lambda g: (g, 0, 0)),       # query tokens
                # Weights / biases: constant index map -> fetched once.
                pl.BlockSpec((E, E), const2d), pl.BlockSpec((1, E), const2d),
                pl.BlockSpec((E, 2 * E), const2d), pl.BlockSpec((1, 2 * E), const2d),
                pl.BlockSpec((E, O), const2d), pl.BlockSpec((1, O), const2d),
                # Head / batch structure matrices.
                pl.BlockSpec((NH, Bt), const2d),
                pl.BlockSpec((NH, E), const2d),
                pl.BlockSpec((NH, Bt * L), const2d),
                pl.BlockSpec((Bt, NH), const2d),
            ],
            out_specs=pl.BlockSpec((1, Bt, O), lambda g: (g, 0, 0)),
        ),
        compiler_params=pltpu.CompilerParams(
            dimension_semantics=("parallel",)),     # batch tiles are independent
    )(tokens, x0, wq_t, bq, wkv_t, bkv, wc_t, bc,
      q_expand, head_mask, neg_bias, head_combine)

    return out.reshape(N, O)                        # (N, output_dim)


def _reference(x, params, num_heads):
    """Pure-JAX reference reproducing F.multi_head_attention_forward."""
    N, C, H, W = x.shape
    E = C
    seq = x.reshape(N, C, H * W).transpose(2, 0, 1)
    seq = jnp.concatenate([seq.mean(axis=0, keepdims=True), seq], axis=0)
    seq = seq + params["pos_emb"][:, None, :]                # (L, N, E)
    L = seq.shape[0]
    head_dim = E // num_heads
    scale = 1.0 / math.sqrt(head_dim)

    q = seq @ params["wq"].T + params["bq"]
    k = seq @ params["wk"].T + params["bk"]
    v = seq @ params["wv"].T + params["bv"]

    def split(t):  # (L, N, E) -> (N, heads, L, Dh)
        return t.reshape(L, N, num_heads, head_dim).transpose(1, 2, 0, 3)

    qh, kh, vh = split(q) * scale, split(k), split(v)
    s = jnp.einsum("nhqd,nhkd->nhqk", qh, kh)
    p = jax.nn.softmax(s, axis=-1)
    o = jnp.einsum("nhqk,nhkd->nhqd", p, vh)                 # (N, H, L, Dh)
    o = o.transpose(2, 0, 1, 3).reshape(L, N, E)
    o = o @ params["wc"].T + params["bc"]                    # (L, N, O)
    return o[0]


if __name__ == "__main__":
    spacial_dim = 4
    embed_dim = 32
    num_heads = 4
    output_dim = 32
    N = 2

    key = jax.random.PRNGKey(0)
    ks = jax.random.split(key, 10)

    params = {
        "pos_emb": jax.random.normal(ks[0], (spacial_dim ** 2 + 1, embed_dim),
                                     jnp.float32) / math.sqrt(embed_dim),
        "wq": jax.random.normal(ks[1], (embed_dim, embed_dim), jnp.float32) * 0.05,
        "bq": jax.random.normal(ks[2], (embed_dim,), jnp.float32) * 0.05,
        "wk": jax.random.normal(ks[3], (embed_dim, embed_dim), jnp.float32) * 0.05,
        "bk": jax.random.normal(ks[4], (embed_dim,), jnp.float32) * 0.05,
        "wv": jax.random.normal(ks[5], (embed_dim, embed_dim), jnp.float32) * 0.05,
        "bv": jax.random.normal(ks[6], (embed_dim,), jnp.float32) * 0.05,
        "wc": jax.random.normal(ks[7], (output_dim, embed_dim), jnp.float32) * 0.05,
        "bc": jax.random.normal(ks[8], (output_dim,), jnp.float32) * 0.05,
    }

    x = jax.random.normal(ks[9], (N, embed_dim, spacial_dim, spacial_dim), jnp.float32)

    out = attention_pool_2d(x, params, num_heads)
    out = jax.block_until_ready(out)

    ref = _reference(x, params, num_heads)
    assert out.shape == (N, output_dim)
    # Tolerance sized for the EUP approximate-reciprocal softmax normalizer;
    # everything else accumulates in exact f32.
    err = jnp.max(jnp.abs(out - ref))
    assert jnp.allclose(out, ref, atol=2e-3, rtol=2e-3), f"max abs err {err}"

    print("KERNEL_OK")
</pallas_src>

<mosaic_0001>
module attributes {stable_mosaic.version = 11 : i64} {
  func.func @_attnpool_kernel(%arg0: i32, %arg1: memref<1x34x32xf32, #tpu.memory_space<vmem>>, %arg2: memref<1x2x32xf32, #tpu.memory_space<vmem>>, %arg3: memref<32x32xf32, #tpu.memory_space<vmem>>, %arg4: memref<1x32xf32, #tpu.memory_space<vmem>>, %arg5: memref<32x64xf32, #tpu.memory_space<vmem>>, %arg6: memref<1x64xf32, #tpu.memory_space<vmem>>, %arg7: memref<32x32xf32, #tpu.memory_space<vmem>>, %arg8: memref<1x32xf32, #tpu.memory_space<vmem>>, %arg9: memref<8x2xf32, #tpu.memory_space<vmem>>, %arg10: memref<8x32xf32, #tpu.memory_space<vmem>>, %arg11: memref<8x34xf32, #tpu.memory_space<vmem>>, %arg12: memref<2x8xf32, #tpu.memory_space<vmem>>, %arg13: memref<1x2x32xf32, #tpu.memory_space<vmem>>) attributes {dimension_semantics = [#tpu.dimension_semantics<parallel>], iteration_bounds = array<i64: 1>, scalar_prefetch = 0 : i64, scratch_operands = 0 : i64, tpu.core_type = #tpu.core_type<tc>, window_params = [{transform_indices = @transform_0, window_bounds = array<i64: 1, 34, 32>}, {transform_indices = @transform_1, window_bounds = array<i64: 1, 2, 32>}, {pipeline_mode = #tpu.pipeline_mode<synchronous>, transform_indices = @transform_2, window_bounds = array<i64: 32, 32>}, {pipeline_mode = #tpu.pipeline_mode<synchronous>, transform_indices = @transform_3, window_bounds = array<i64: 1, 32>}, {pipeline_mode = #tpu.pipeline_mode<synchronous>, transform_indices = @transform_4, window_bounds = array<i64: 32, 64>}, {pipeline_mode = #tpu.pipeline_mode<synchronous>, transform_indices = @transform_5, window_bounds = array<i64: 1, 64>}, {pipeline_mode = #tpu.pipeline_mode<synchronous>, transform_indices = @transform_6, window_bounds = array<i64: 32, 32>}, {pipeline_mode = #tpu.pipeline_mode<synchronous>, transform_indices = @transform_7, window_bounds = array<i64: 1, 32>}, {pipeline_mode = #tpu.pipeline_mode<synchronous>, transform_indices = @transform_8, window_bounds = array<i64: 8, 2>}, {pipeline_mode = #tpu.pipeline_mode<synchronous>, transform_indices = @transform_9, window_bounds = array<i64: 8, 32>}, {pipeline_mode = #tpu.pipeline_mode<synchronous>, transform_indices = @transform_10, window_bounds = array<i64: 8, 34>}, {pipeline_mode = #tpu.pipeline_mode<synchronous>, transform_indices = @transform_11, window_bounds = array<i64: 2, 8>}, {transform_indices = @transform_12, window_bounds = array<i64: 1, 2, 32>}]} {
    %c0 = arith.constant 0 : index
    %c0_0 = arith.constant 0 : index
    %c0_1 = arith.constant 0 : index
    %0 = vector.load %arg1[%c0, %c0_0, %c0_1] : memref<1x34x32xf32, #tpu.memory_space<vmem>>, vector<1x34x32xf32>
    %1 = vector.shape_cast %0 : vector<1x34x32xf32> to vector<34x32xf32>
    %c0_2 = arith.constant 0 : index
    %c0_3 = arith.constant 0 : index
    %c0_4 = arith.constant 0 : index
    %2 = vector.load %arg2[%c0_2, %c0_3, %c0_4] : memref<1x2x32xf32, #tpu.memory_space<vmem>>, vector<1x2x32xf32>
    %3 = vector.shape_cast %2 : vector<1x2x32xf32> to vector<2x32xf32>
    %c0_5 = arith.constant 0 : index
    %c0_6 = arith.constant 0 : index
    %4 = vector.load %arg5[%c0_5, %c0_6] : memref<32x64xf32, #tpu.memory_space<vmem>>, vector<32x64xf32>
    %cst = arith.constant dense<0.000000e+00> : vector<34x64xf32>
    %5 = tpu.matmul %1, %4, %cst {dimension_numbers = #tpu.dot_dimension_numbers<[1], [0], [0], [1], [0, 0, 1, 1], [], []>} : vector<34x32xf32>, vector<32x64xf32>, vector<34x64xf32> -> vector<34x64xf32>
    %c0_7 = arith.constant 0 : index
    %c0_8 = arith.constant 0 : index
    %6 = vector.load %arg6[%c0_7, %c0_8] : memref<1x64xf32, #tpu.memory_space<vmem>>, vector<1x64xf32>
    %7 = vector.broadcast %6 : vector<1x64xf32> to vector<34x64xf32>
    %8 = arith.addf %5, %7 : vector<34x64xf32>
    %9 = vector.extract_strided_slice %8 {offsets = [0, 0], sizes = [34, 32], strides = [1, 1]} : vector<34x64xf32> to vector<34x32xf32>
    %10 = vector.extract_strided_slice %8 {offsets = [0, 32], sizes = [34, 32], strides = [1, 1]} : vector<34x64xf32> to vector<34x32xf32>
    %c0_9 = arith.constant 0 : index
    %c0_10 = arith.constant 0 : index
    %11 = vector.load %arg3[%c0_9, %c0_10] : memref<32x32xf32, #tpu.memory_space<vmem>>, vector<32x32xf32>
    %cst_11 = arith.constant dense<0.000000e+00> : vector<2x32xf32>
    %12 = tpu.matmul %3, %11, %cst_11 {dimension_numbers = #tpu.dot_dimension_numbers<[1], [0], [0], [1], [0, 0, 1, 1], [], []>} : vector<2x32xf32>, vector<32x32xf32>, vector<2x32xf32> -> vector<2x32xf32>
    %c0_12 = arith.constant 0 : index
    %c0_13 = arith.constant 0 : index
    %13 = vector.load %arg4[%c0_12, %c0_13] : memref<1x32xf32, #tpu.memory_space<vmem>>, vector<1x32xf32>
    %14 = vector.broadcast %13 : vector<1x32xf32> to vector<2x32xf32>
    %15 = arith.addf %12, %14 : vector<2x32xf32>
    %cst_14 = arith.constant 0.353553385 : f32
    %16 = vector.broadcast %cst_14 : f32 to vector<2x32xf32>
    %17 = arith.mulf %15, %16 : vector<2x32xf32>
    %c0_15 = arith.constant 0 : index
    %c0_16 = arith.constant 0 : index
    %18 = vector.load %arg9[%c0_15, %c0_16] : memref<8x2xf32, #tpu.memory_space<vmem>>, vector<8x2xf32>
    %cst_17 = arith.constant dense<0.000000e+00> : vector<8x32xf32>
    %19 = tpu.matmul %18, %17, %cst_17 {dimension_numbers = #tpu.dot_dimension_numbers<[1], [0], [0], [1], [0, 0, 1, 1], [], []>} : vector<8x2xf32>, vector<2x32xf32>, vector<8x32xf32> -> vector<8x32xf32>
    %c0_18 = arith.constant 0 : index
    %c0_19 = arith.constant 0 : index
    %20 = vector.load %arg10[%c0_18, %c0_19] : memref<8x32xf32, #tpu.memory_space<vmem>>, vector<8x32xf32>
    %21 = arith.mulf %19, %20 : vector<8x32xf32>
    %cst_20 = arith.constant dense<0.000000e+00> : vector<8x34xf32>
    %22 = tpu.matmul %21, %9, %cst_20 {dimension_numbers = #tpu.dot_dimension_numbers<[1], [1], [0], [0], [0, 0, 1, 0], [], []>} : vector<8x32xf32>, vector<34x32xf32>, vector<8x34xf32> -> vector<8x34xf32>
    %c0_21 = arith.constant 0 : index
    %c0_22 = arith.constant 0 : index
    %23 = vector.load %arg11[%c0_21, %c0_22] : memref<8x34xf32, #tpu.memory_space<vmem>>, vector<8x34xf32>
    %24 = arith.addf %22, %23 : vector<8x34xf32>
    %cst_23 = arith.constant dense<0xFF800000> : vector<8xf32>
    %25 = vector.multi_reduction <maximumf>, %24, %cst_23 [1] : vector<8x34xf32> to vector<8xf32>
    %26 = vector.shape_cast %25 : vector<8xf32> to vector<8x1xf32>
    %27 = vector.broadcast %26 : vector<8x1xf32> to vector<8x34xf32>
    %28 = arith.subf %24, %27 : vector<8x34xf32>
    %29 = math.exp %28 : vector<8x34xf32>
    %cst_24 = arith.constant dense<0.000000e+00> : vector<8xf32>
    %30 = vector.multi_reduction <add>, %29, %cst_24 [1] : vector<8x34xf32> to vector<8xf32>
    %31 = vector.shape_cast %30 : vector<8xf32> to vector<8x1xf32>
    %32 = tpu.reciprocal %31 {approx = true} : vector<8x1xf32> -> vector<8x1xf32>
    %33 = vector.broadcast %32 : vector<8x1xf32> to vector<8x34xf32>
    %34 = arith.mulf %29, %33 : vector<8x34xf32>
    %cst_25 = arith.constant dense<0.000000e+00> : vector<8x32xf32>
    %35 = tpu.matmul %34, %10, %cst_25 {dimension_numbers = #tpu.dot_dimension_numbers<[1], [0], [0], [1], [0, 0, 1, 1], [], []>} : vector<8x34xf32>, vector<34x32xf32>, vector<8x32xf32> -> vector<8x32xf32>
    %c0_26 = arith.constant 0 : index
    %c0_27 = arith.constant 0 : index
    %36 = vector.load %arg12[%c0_26, %c0_27] : memref<2x8xf32, #tpu.memory_space<vmem>>, vector<2x8xf32>
    %c0_28 = arith.constant 0 : index
    %c0_29 = arith.constant 0 : index
    %37 = vector.load %arg10[%c0_28, %c0_29] : memref<8x32xf32, #tpu.memory_space<vmem>>, vector<8x32xf32>
    %38 = arith.mulf %37, %35 : vector<8x32xf32>
    %cst_30 = arith.constant dense<0.000000e+00> : vector<2x32xf32>
    %39 = tpu.matmul %36, %38, %cst_30 {dimension_numbers = #tpu.dot_dimension_numbers<[1], [0], [0], [1], [0, 0, 1, 1], [], []>} : vector<2x8xf32>, vector<8x32xf32>, vector<2x32xf32> -> vector<2x32xf32>
    %c0_31 = arith.constant 0 : index
    %c0_32 = arith.constant 0 : index
    %40 = vector.load %arg7[%c0_31, %c0_32] : memref<32x32xf32, #tpu.memory_space<vmem>>, vector<32x32xf32>
    %cst_33 = arith.constant dense<0.000000e+00> : vector<2x32xf32>
    %41 = tpu.matmul %39, %40, %cst_33 {dimension_numbers = #tpu.dot_dimension_numbers<[1], [0], [0], [1], [0, 0, 1, 1], [], []>} : vector<2x32xf32>, vector<32x32xf32>, vector<2x32xf32> -> vector<2x32xf32>
    %c0_34 = arith.constant 0 : index
    %c0_35 = arith.constant 0 : index
    %42 = vector.load %arg8[%c0_34, %c0_35] : memref<1x32xf32, #tpu.memory_space<vmem>>, vector<1x32xf32>
    %43 = vector.broadcast %42 : vector<1x32xf32> to vector<2x32xf32>
    %44 = arith.addf %41, %43 : vector<2x32xf32>
    %c0_36 = arith.constant 0 : index
    %c0_37 = arith.constant 0 : index
    %c0_38 = arith.constant 0 : index
    %45 = vector.load %arg13[%c0_36, %c0_37, %c0_38] : memref<1x2x32xf32, #tpu.memory_space<vmem>>, vector<1x2x32xf32>
    %46 = vector.shape_cast %45 : vector<1x2x32xf32> to vector<2x32xf32>
    %47 = vector.shape_cast %44 : vector<2x32xf32> to vector<1x2x32xf32>
    tpu.vector_store %arg13[%c0_36, %c0_37, %c0_38], %47 {strides = array<i32>} : memref<1x2x32xf32, #tpu.memory_space<vmem>>, vector<1x2x32xf32>,
    return
  }
  func.func @transform_0(%arg0: i32) -> (i32, i32, i32) {
    %c0_i32 = arith.constant 0 : i32
    %c0_i32_0 = arith.constant 0 : i32
    %c0_i32_1 = arith.constant 0 : i32
    return %arg0, %c0_i32, %c0_i32_0 : i32, i32, i32
  }
  func.func @transform_1(%arg0: i32) -> (i32, i32, i32) {
    %c0_i32 = arith.constant 0 : i32
    %c0_i32_0 = arith.constant 0 : i32
    %c0_i32_1 = arith.constant 0 : i32
    return %arg0, %c0_i32, %c0_i32_0 : i32, i32, i32
  }
  func.func @transform_2(%arg0: i32) -> (i32, i32) {
    %c0_i32 = arith.constant 0 : i32
    %c0_i32_0 = arith.constant 0 : i32
    %c0_i32_1 = arith.constant 0 : i32
    return %c0_i32, %c0_i32_0 : i32, i32
  }
  func.func @transform_3(%arg0: i32) -> (i32, i32) {
    %c0_i32 = arith.constant 0 : i32
    %c0_i32_0 = arith.constant 0 : i32
    %c0_i32_1 = arith.constant 0 : i32
    return %c0_i32, %c0_i32_0 : i32, i32
  }
  func.func @transform_4(%arg0: i32) -> (i32, i32) {
    %c0_i32 = arith.constant 0 : i32
    %c0_i32_0 = arith.constant 0 : i32
    %c0_i32_1 = arith.constant 0 : i32
    return %c0_i32, %c0_i32_0 : i32, i32
  }
  func.func @transform_5(%arg0: i32) -> (i32, i32) {
    %c0_i32 = arith.constant 0 : i32
    %c0_i32_0 = arith.constant 0 : i32
    %c0_i32_1 = arith.constant 0 : i32
    return %c0_i32, %c0_i32_0 : i32, i32
  }
  func.func @transform_6(%arg0: i32) -> (i32, i32) {
    %c0_i32 = arith.constant 0 : i32
    %c0_i32_0 = arith.constant 0 : i32
    %c0_i32_1 = arith.constant 0 : i32
    return %c0_i32, %c0_i32_0 : i32, i32
  }
  func.func @transform_7(%arg0: i32) -> (i32, i32) {
    %c0_i32 = arith.constant 0 : i32
    %c0_i32_0 = arith.constant 0 : i32
    %c0_i32_1 = arith.constant 0 : i32
    return %c0_i32, %c0_i32_0 : i32, i32
  }
  func.func @transform_8(%arg0: i32) -> (i32, i32) {
    %c0_i32 = arith.constant 0 : i32
    %c0_i32_0 = arith.constant 0 : i32
    %c0_i32_1 = arith.constant 0 : i32
    return %c0_i32, %c0_i32_0 : i32, i32
  }
  func.func @transform_9(%arg0: i32) -> (i32, i32) {
    %c0_i32 = arith.constant 0 : i32
    %c0_i32_0 = arith.constant 0 : i32
    %c0_i32_1 = arith.constant 0 : i32
    return %c0_i32, %c0_i32_0 : i32, i32
  }
  func.func @transform_10(%arg0: i32) -> (i32, i32) {
    %c0_i32 = arith.constant 0 : i32
    %c0_i32_0 = arith.constant 0 : i32
    %c0_i32_1 = arith.constant 0 : i32
    return %c0_i32, %c0_i32_0 : i32, i32
  }
  func.func @transform_11(%arg0: i32) -> (i32, i32) {
    %c0_i32 = arith.constant 0 : i32
    %c0_i32_0 = arith.constant 0 : i32
    %c0_i32_1 = arith.constant 0 : i32
    return %c0_i32, %c0_i32_0 : i32, i32
  }
  func.func @transform_12(%arg0: i32) -> (i32, i32, i32) {
    %c0_i32 = arith.constant 0 : i32
    %c0_i32_0 = arith.constant 0 : i32
    %c0_i32_1 = arith.constant 0 : i32
    return %arg0, %c0_i32, %c0_i32_0 : i32, i32, i32
  }
}

</mosaic_0001>

<llo_original>
// kernel: tpu_custom_call.1
$region0: #{tpu_custom_call.1}
  #allocation0 [shape = 'u32[]', space=smem, size = 0x4, offset = 0x4, fixed_abs, tag = 'smem constant byte address 0x4 - core index']
  #allocation1 [shape = 'u32[72,128]{1,0:T(1,128)}', space=vmem, size = 0x9000, scoped, tag = 'internal scratch']
  %s0 = inlined_call_operand.vmem [shape: f32[1,34,32], index: 0, kind: input, shape index: {}]
  %s1 = inlined_call_operand.vmem [shape: f32[1,2,32], index: 1, kind: input, shape index: {}]
  %s2 = inlined_call_operand.vmem [shape: f32[32,32], index: 2, kind: input, shape index: {}]
  %s3 = inlined_call_operand.hbm [shape: f32[1,32], index: 3, kind: input, shape index: {}]
  %s4 = inlined_call_operand.vmem [shape: f32[32,64], index: 4, kind: input, shape index: {}]
  %s5 = inlined_call_operand.hbm [shape: f32[1,64], index: 5, kind: input, shape index: {}]
  %s6 = inlined_call_operand.hbm [shape: f32[32,32], index: 6, kind: input, shape index: {}]
  %s7 = inlined_call_operand.vmem [shape: f32[1,32], index: 7, kind: input, shape index: {}]
  %s8 = inlined_call_operand.vmem [shape: f32[8,2], index: 8, kind: input, shape index: {}]
  %s9 = inlined_call_operand.vmem [shape: f32[8,32], index: 9, kind: input, shape index: {}]
  %s10 = inlined_call_operand.vmem [shape: f32[8,34], index: 10, kind: input, shape index: {}]
  %s11 = inlined_call_operand.vmem [shape: f32[2,8], index: 11, kind: input, shape index: {}]
  %s12 = inlined_call_operand.hbm [shape: f32[1,2,32], index: 12, kind: output, shape index: {}]
  %s13 = sld [smem:[#allocation0]]
  $region70: #{tpu_custom_call.1} parent=0
    _
  %s15 = ssub.s32 1, %s13
  %s16 = scalar_select 0, %s15, %s13
  $region1: #{tpu_custom_call.1} parent=0
    #allocation2 [shape = 'u8[512]{0}', space=vmem, size = 0x400, scoped, tag = 'input window, operand 3, single buffered']
    #allocation3 [shape = 's32[1]{0}', space=sflag, size = 0x4, scoped, tag = 'scoped memory for tpu_custom_call.1']
    #allocation4 [shape = 's32[1]{0}', space=sflag, size = 0x4, scoped, tag = 'scoped memory for tpu_custom_call.1']
    #allocation5 [shape = 'u8[512]{0}', space=vmem, size = 0x400, scoped, tag = 'input window, operand 5, single buffered']
    #allocation6 [shape = 's32[1]{0}', space=sflag, size = 0x4, scoped, tag = 'scoped memory for tpu_custom_call.1']
    #allocation7 [shape = 'u8[16384]{0}', space=vmem, size = 0x4000, scoped, tag = 'input window, operand 6, single buffered']
    #allocation8 [shape = 'u8[1024]{0}', space=vmem, size = 0x400, scoped, tag = 'output window, operand 0, single buffered']
    %17 = vsyncpa [#allocation3], 0
    %18 = vsyncpa [#allocation6], 0
    %19 = vsyncpa [#allocation4], 0
    // Predicated region
    $region2: #{tpu_custom_call.1} parent=1 // pred_check
      _
    $region3: #{tpu_custom_call.1} parent=1 // pred_check_branch
      %21 = sbr.rel (0) target = $region5
    $region4: #{tpu_custom_call.1} parent=1 // pred_region
      _
    $region5: #{tpu_custom_call.1} parent=1 // pred_fallthru
      _
    // Predicated region
    $region6: #{tpu_custom_call.1} parent=1 // pred_check
      _
    $region7: #{tpu_custom_call.1} parent=1 // pred_check_branch
      %23 = sbr.rel (0) target = $region9
    $region8: #{tpu_custom_call.1} parent=1 // pred_region
      _
    $region9: #{tpu_custom_call.1} parent=1 // pred_fallthru
      _
    // Predicated region
    $region10: #{tpu_custom_call.1} parent=1 // pred_check
      _
    $region11: #{tpu_custom_call.1} parent=1 // pred_check_branch
      %25 = sbr.rel (0) target = $region13
    $region12: #{tpu_custom_call.1} parent=1 // pred_region
      _
    $region13: #{tpu_custom_call.1} parent=1 // pred_fallthru
      _
    // Predicated region
    $region14: #{tpu_custom_call.1} parent=1 // pred_check
      _
    $region15: #{tpu_custom_call.1} parent=1 // pred_check_branch
      %27 = sbr.rel (0) target = $region17
    $region16: #{tpu_custom_call.1} parent=1 // pred_region
      %29 = vsyncadd [#allocation3], 0
      %s31 = sshll.u32 %s3, 4
      %s32 = int_to_ptr.hbm [resolvable:$true] %s31
      %s33 = sshll.u32 [#allocation2], 4
      %s34 = int_to_ptr.vmem [resolvable:$true] %s33
      %36 = dma.hbm_to_vmem [thread:$0]  %s32, 16, %s34, [#allocation3]
    $region17: #{tpu_custom_call.1} parent=1 // pred_fallthru
      _
    // Predicated region
    $region18: #{tpu_custom_call.1} parent=1 // pred_check
      _
    $region19: #{tpu_custom_call.1} parent=1 // pred_check_branch
      %38 = sbr.rel (0) target = $region21
    $region20: #{tpu_custom_call.1} parent=1 // pred_region
      _
    $region21: #{tpu_custom_call.1} parent=1 // pred_fallthru
      _
    // Predicated region
    $region22: #{tpu_custom_call.1} parent=1 // pred_check
      _
    $region23: #{tpu_custom_call.1} parent=1 // pred_check_branch
      %40 = sbr.rel (0) target = $region25
    $region24: #{tpu_custom_call.1} parent=1 // pred_region
      %42 = vsyncadd [#allocation6], 0
      %s44 = sshll.u32 %s5, 4
      %s45 = int_to_ptr.hbm [resolvable:$true] %s44
      %s46 = sshll.u32 [#allocation5], 4
      %s47 = int_to_ptr.vmem [resolvable:$true] %s46
      %49 = dma.hbm_to_vmem [thread:$0]  %s45, 16, %s47, [#allocation6]
    $region25: #{tpu_custom_call.1} parent=1 // pred_fallthru
      _
    // Predicated region
    $region26: #{tpu_custom_call.1} parent=1 // pred_check
      _
    $region27: #{tpu_custom_call.1} parent=1 // pred_check_branch
      %51 = sbr.rel (0) target = $region29
    $region28: #{tpu_custom_call.1} parent=1 // pred_region
      %53 = vsyncadd [#allocation6], 0
      %s54 = sshll.u32 %s6, 4
      %s55 = int_to_ptr.hbm [resolvable:$true] %s54
      %s56 = sshll.u32 [#allocation7], 4
      %s57 = int_to_ptr.vmem [resolvable:$true] %s56
      %62 = dma.hbm_to_vmem [thread:$0]  %s55, 512, %s57, [#allocation6], 128, 128, 8
    $region29: #{tpu_custom_call.1} parent=1 // pred_fallthru
      _
    // Predicated region
    $region30: #{tpu_custom_call.1} parent=1 // pred_check
      _
    $region31: #{tpu_custom_call.1} parent=1 // pred_check_branch
      %64 = sbr.rel (0) target = $region33
    $region32: #{tpu_custom_call.1} parent=1 // pred_region
      _
    $region33: #{tpu_custom_call.1} parent=1 // pred_fallthru
      _
    // Predicated region
    $region34: #{tpu_custom_call.1} parent=1 // pred_check
      _
    $region35: #{tpu_custom_call.1} parent=1 // pred_check_branch
      %66 = sbr.rel (0) target = $region37
    $region36: #{tpu_custom_call.1} parent=1 // pred_region
      _
    $region37: #{tpu_custom_call.1} parent=1 // pred_fallthru
      _
    // Predicated region
    $region38: #{tpu_custom_call.1} parent=1 // pred_check
      _
    $region39: #{tpu_custom_call.1} parent=1 // pred_check_branch
      %68 = sbr.rel (0) target = $region41
    $region40: #{tpu_custom_call.1} parent=1 // pred_region
      _
    $region41: #{tpu_custom_call.1} parent=1 // pred_fallthru
      _
    // Predicated region
    $region42: #{tpu_custom_call.1} parent=1 // pred_check
      _
    $region43: #{tpu_custom_call.1} parent=1 // pred_check_branch
      %70 = sbr.rel (0) target = $region45
    $region44: #{tpu_custom_call.1} parent=1 // pred_region
      _
    $region45: #{tpu_custom_call.1} parent=1 // pred_fallthru
      _
    // Predicated region
    $region46: #{tpu_custom_call.1} parent=1 // pred_check
      _
    $region47: #{tpu_custom_call.1} parent=1 // pred_check_branch
      %72 = sbr.rel (0) target = $region49
    $region48: #{tpu_custom_call.1} parent=1 // pred_region
      _
    $region49: #{tpu_custom_call.1} parent=1 // pred_fallthru
      _
    // Predicated region
    $region50: #{tpu_custom_call.1} parent=1 // pred_check
      _
    $region51: #{tpu_custom_call.1} parent=1 // pred_check_branch
      %74 = sbr.rel (0) target = $region53
    $region52: #{tpu_custom_call.1} parent=1 // pred_region
      %76 = dma.done [#allocation3], 16
    $region53: #{tpu_custom_call.1} parent=1 // pred_fallthru
      _
    // Predicated region
    $region54: #{tpu_custom_call.1} parent=1 // pred_check
      _
    $region55: #{tpu_custom_call.1} parent=1 // pred_check_branch
      %78 = sbr.rel (0) target = $region57
    $region56: #{tpu_custom_call.1} parent=1 // pred_region
      %80 = dma.done [#allocation6], 16
    $region57: #{tpu_custom_call.1} parent=1 // pred_fallthru
      _
    // Predicated region
    $region58: #{tpu_custom_call.1} parent=1 // pred_check
      _
    $region59: #{tpu_custom_call.1} parent=1 // pred_check_branch
      %82 = sbr.rel (0) target = $region61
    $region60: #{tpu_custom_call.1} parent=1 // pred_region
      %84 = dma.done [#allocation6], 512
    $region61: #{tpu_custom_call.1} parent=1 // pred_fallthru
      _
    %v85 = vld [vmem:[%s0] sm:$0xff]
    %v86 = vld [vmem:[%s0 + $0x8] sm:$0xff]
    %v87 = vld [vmem:[%s0 + $0x10] sm:$0xff]
    %v88 = vld [vmem:[%s0 + $0x18] sm:$0xff]
    %v89 = vld [vmem:[%s0 + $0x20] sm:$0x3]
    %v90 = vld [vmem:[%s1] sm:$0x3]
    %v91 = vld [vmem:[%s4] sm:$0xff]
    %v92 = vld [vmem:[%s4 + $0x8] sm:$0xff]
    %v93 = vld [vmem:[%s4 + $0x10] sm:$0xff]
    %v94 = vld [vmem:[%s4 + $0x18] sm:$0xff]
    %v95 = vld [vmem:[#allocation5] sm:$0x1]
    %v97 = vperm.slane %v95, 0
    %vm99 = vcmask 261120
    %v101 = vsel %vm99, %v85, 0
    %v104 = vsel %vm99, %v86, 0
    %v107 = vsel %vm99, %v87, 0
    %v110 = vsel %vm99, %v88, 0
    %v113 = vsel %vm99, %v89, 0
    %115 = vmatpush.msra.mxu0 0.0
    %116 = vmatpush.msra.mxu0 0.0
    %117 = vmatpush.msra.mxu0 0.0
    %118 = vmatpush.msra.mxu0 0.0
    %119 = vmatpush.msra.mxu0 0.0
    %120 = vmatpush.msra.mxu0 0.0
    %121 = vmatpush.msra.mxu0 0.0
    %122 = vmatpush.msra.mxu0 0.0
    %123 = vmatpush.msra.mxu0 0.0
    %124 = vmatpush.msra.mxu0 0.0
    %125 = vmatpush.msra.mxu0 0.0
    %126 = vmatpush.msra.mxu0 0.0
    %127 = vmatpush.msra.mxu0 %v94
    %128 = vmatpush.msra.mxu0 %v93
    %129 = vmatpush.msra.mxu0 %v92
    %130 = vmatpush.msra.mxu0 %v91
    %131 = vmatmul.f32.gmra.mxu0 %v101
    %v132 = vpop.f32.mrf.mxu0
    %v133 = vadd.f32 %v97, %v132
    %134 = vmatmul.f32.gmra.mxu0 %v104
    %v135 = vpop.f32.mrf.mxu0
    %v136 = vadd.f32 %v97, %v135
    %137 = vmatmul.f32.gmra.mxu0 %v107
    %v138 = vpop.f32.mrf.mxu0
    %v139 = vadd.f32 %v97, %v138
    %140 = vmatmul.f32.gmra.mxu0 %v110
    %v141 = vpop.f32.mrf.mxu0
    %v142 = vadd.f32 %v97, %v141
    %143 = vmatmul.f32.gmra.mxu0 %v113
    %v144 = vpop.f32.mrf.mxu0
    %v145 = vadd.f32 %v97, %v144
    %146 = vdwg.mxu0
    %v147 = vld [vmem:[%s2] sm:$0xff]
    %v148 = vld [vmem:[%s2 + $0x8] sm:$0xff]
    %v149 = vld [vmem:[%s2 + $0x10] sm:$0xff]
    %v150 = vld [vmem:[%s2 + $0x18] sm:$0xff]
    %v151 = vld [vmem:[#allocation2] sm:$0x1]
    %v153 = vperm.slane %v151, 0
    %v156 = vsel %vm99, %v90, 0
    %158 = vmatpush.msra.mxu0 0.0
    %159 = vmatpush.msra.mxu0 0.0
    %160 = vmatpush.msra.mxu0 0.0
    %161 = vmatpush.msra.mxu0 0.0
    %162 = vmatpush.msra.mxu0 0.0
    %163 = vmatpush.msra.mxu0 0.0
    %164 = vmatpush.msra.mxu0 0.0
    %165 = vmatpush.msra.mxu0 0.0
    %166 = vmatpush.msra.mxu0 0.0
    %167 = vmatpush.msra.mxu0 0.0
    %168 = vmatpush.msra.mxu0 0.0
    %169 = vmatpush.msra.mxu0 0.0
    %170 = vmatpush.msra.mxu0 %v150
    %171 = vmatpush.msra.mxu0 %v149
    %172 = vmatpush.msra.mxu0 %v148
    %173 = vmatpush.msra.mxu0 %v147
    %174 = vmatmul.f32.gmra.mxu0 %v156
    %v175 = vpop.f32.mrf.mxu0
    %v176 = vadd.f32 %v153, %v175
    %177 = vdwg.mxu0
    %v178 = vmul.f32 %v176, 0.35355338
    %v179 = vld [vmem:[%s8] sm:$0xff]
    %vm180 = vcmask 15360
    %v182 = vsel %vm180, %v179, 0
    %vm184 = vcmask 1041408
    %v186 = vsel %vm184, %v178, 0
    %188 = vmatpush.msra.mxu0 0.0
    %189 = vmatpush.msra.mxu0 0.0
    %190 = vmatpush.msra.mxu0 0.0
    %191 = vmatpush.msra.mxu0 0.0
    %192 = vmatpush.msra.mxu0 0.0
    %193 = vmatpush.msra.mxu0 0.0
    %194 = vmatpush.msra.mxu0 0.0
    %195 = vmatpush.msra.mxu0 0.0
    %196 = vmatpush.msra.mxu0 0.0
    %197 = vmatpush.msra.mxu0 0.0
    %198 = vmatpush.msra.mxu0 0.0
    %199 = vmatpush.msra.mxu0 0.0
    %200 = vmatpush.msra.mxu0 0.0
    %201 = vmatpush.msra.mxu0 0.0
    %202 = vmatpush.msra.mxu0 0.0
    %203 = vmatpush.msra.mxu0 %v186
    %204 = vmatmul.f32.gmra.mxu0 %v182
    %v205 = vpop.f32.mrf.mxu0
    %v206 = vadd.f32 0.0, %v205
    %207 = vdwg.mxu0
    %v208 = vld [vmem:[%s9] sm:$0xff]
    %v209 = vmul.f32 %v206, %v208
    %v210 = vld [vmem:[%s10] sm:$0xff]
    %v212 = vsel %vm99, %v209, 0
    %v215 = vsel %vm99, %v133, 0
    %v218 = vsel %vm99, %v136, 0
    %v221 = vsel %vm99, %v139, 0
    %v224 = vsel %vm99, %v142, 0
    %v227 = vsel %vm99, %v145, 0
    %229 = vmatpush.xpose.msra.mxu0 0.0
    %230 = vmatpush.xpose.msra.mxu0 0.0
    %231 = vmatpush.xpose.msra.mxu0 0.0
    %232 = vmatpush.xpose.msra.mxu0 0.0
    %233 = vmatpush.xpose.msra.mxu0 0.0
    %234 = vmatpush.xpose.msra.mxu0 0.0
    %235 = vmatpush.xpose.msra.mxu0 0.0
    %236 = vmatpush.xpose.msra.mxu0 0.0
    %237 = vmatpush.xpose.msra.mxu0 0.0
    %238 = vmatpush.xpose.msra.mxu0 0.0
    %239 = vmatpush.xpose.msra.mxu0 0.0
    %240 = vmatpush.xpose.msra.mxu0 %v227
    %241 = vmatpush.xpose.msra.mxu0 %v224
    %242 = vmatpush.xpose.msra.mxu0 %v221
    %243 = vmatpush.xpose.msra.mxu0 %v218
    %244 = vmatpush.xpose.msra.mxu0 %v215
    %245 = vmatmul.f32.gmra.mxu0 %v212
    %v246 = vpop.f32.mrf.mxu0
    %v247 = vadd.f32 %v210, %v246
    %248 = vdwg.mxu0
    %vm249 = vcmask 277504
    %v250 = vsel %vm249, %v247, -inf
    %251 = vmax.xlane.f32.xlu0 %v250
    %v252 = vpop.xlane.xlu0 %251
    %v253 = vsub.f32 %v247, %v252
    %v254 = vmul.f32 %v253, 1.442695
    %v255 = vpow.pop %v254
    %v256 = vsel %vm249, %v255, 0.0
    %257 = vadd.xlane.f32.xlu0 %v256
    %v258 = vpop.xlane.xlu0 %257
    %v259 = vrcp.pop %v258
    %v260 = vmul.f32 %v255, %v259
    %261 = vrot.lane.b32.xlu0 %v133, 96
    %v262 = vpop.permute.xlu0 %261
    %263 = vrot.lane.b32.xlu0 %v136, 96
    %v264 = vpop.permute.xlu0 %263
    %265 = vrot.lane.b32.xlu0 %v139, 96
    %v266 = vpop.permute.xlu0 %265
    %267 = vrot.lane.b32.xlu0 %v142, 96
    %v268 = vpop.permute.xlu0 %267
    %269 = vrot.lane.b32.xlu0 %v145, 96
    %v270 = vpop.permute.xlu0 %269
    %v276 = vsel %vm249, %v260, 0
    %v278 = vsel %vm184, %v270, 0
    %280 = vmatpush.msra.mxu0 0.0
    %281 = vmatpush.msra.mxu0 0.0
    %282 = vmatpush.msra.mxu0 0.0
    %283 = vmatpush.msra.mxu0 0.0
    %284 = vmatpush.msra.mxu0 0.0
    %285 = vmatpush.msra.mxu0 0.0
    %286 = vmatpush.msra.mxu0 0.0
    %287 = vmatpush.msra.mxu0 0.0
    %288 = vmatpush.msra.mxu0 0.0
    %289 = vmatpush.msra.mxu0 0.0
    %290 = vmatpush.msra.mxu0 0.0
    %291 = vmatpush.msra.mxu0 %v278
    %292 = vmatpush.msra.mxu0 %v268
    %293 = vmatpush.msra.mxu0 %v266
    %294 = vmatpush.msra.mxu0 %v264
    %295 = vmatpush.msra.mxu0 %v262
    %296 = vmatmul.f32.gmra.mxu0 %v276
    %v297 = vpop.f32.mrf.mxu0
    %v298 = vadd.f32 0.0, %v297
    %299 = vdwg.mxu0
    %v300 = vld [vmem:[%s11] sm:$0x3]
    %v301 = vmul.f32 %v208, %v298
    %vm302 = vcmask 64512
    %v304 = vsel %vm302, %v300, 0
    %306 = vmatpush.msra.mxu0 0.0
    %307 = vmatpush.msra.mxu0 0.0
    %308 = vmatpush.msra.mxu0 0.0
    %309 = vmatpush.msra.mxu0 0.0
    %310 = vmatpush.msra.mxu0 0.0
    %311 = vmatpush.msra.mxu0 0.0
    %312 = vmatpush.msra.mxu0 0.0
    %313 = vmatpush.msra.mxu0 0.0
    %314 = vmatpush.msra.mxu0 0.0
    %315 = vmatpush.msra.mxu0 0.0
    %316 = vmatpush.msra.mxu0 0.0
    %317 = vmatpush.msra.mxu0 0.0
    %318 = vmatpush.msra.mxu0 0.0
    %319 = vmatpush.msra.mxu0 0.0
    %320 = vmatpush.msra.mxu0 0.0
    %321 = vmatpush.msra.mxu0 %v301
    %322 = vmatmul.f32.gmra.mxu0 %v304
    %v323 = vpop.f32.mrf.mxu0
    %v324 = vadd.f32 0.0, %v323
    %325 = vdwg.mxu0
    %v326 = vld [vmem:[#allocation7] sm:$0xff]
    %v327 = vld [vmem:[#allocation7 + $0x8] sm:$0xff]
    %v328 = vld [vmem:[#allocation7 + $0x10] sm:$0xff]
    %v329 = vld [vmem:[#allocation7 + $0x18] sm:$0xff]
    %v330 = vld [vmem:[%s7] sm:$0x1]
    %v332 = vperm.slane %v330, 0
    %v335 = vsel %vm99, %v324, 0
    %337 = vmatpush.msra.mxu0 0.0
    %338 = vmatpush.msra.mxu0 0.0
    %339 = vmatpush.msra.mxu0 0.0
    %340 = vmatpush.msra.mxu0 0.0
    %341 = vmatpush.msra.mxu0 0.0
    %342 = vmatpush.msra.mxu0 0.0
    %343 = vmatpush.msra.mxu0 0.0
    %344 = vmatpush.msra.mxu0 0.0
    %345 = vmatpush.msra.mxu0 0.0
    %346 = vmatpush.msra.mxu0 0.0
    %347 = vmatpush.msra.mxu0 0.0
    %348 = vmatpush.msra.mxu0 0.0
    %349 = vmatpush.msra.mxu0 %v329
    %350 = vmatpush.msra.mxu0 %v328
    %351 = vmatpush.msra.mxu0 %v327
    %352 = vmatpush.msra.mxu0 %v326
    %353 = vmatmul.f32.gmra.mxu0 %v335
    %v354 = vpop.f32.mrf.mxu0
    %v355 = vadd.f32 %v332, %v354
    %356 = vdwg.mxu0
    %vm357 = vcmask 254976
    %358 = vst.msk [vmem:[#allocation8] sm:$0x3] %vm357, %v355
    // Predicated region
    $region62: #{tpu_custom_call.1} parent=1 // pred_check
      _
    $region63: #{tpu_custom_call.1} parent=1 // pred_check_branch
      %360 = sbr.rel (0) target = $region65
    $region64: #{tpu_custom_call.1} parent=1 // pred_region
      %362 = vsyncadd [#allocation4], 0
      %s364 = sshll.u32 [#allocation8], 4
      %s365 = int_to_ptr.vmem [resolvable:$true] %s364
      %s366 = sshll.u32 %s12, 4
      %s367 = int_to_ptr.hbm [resolvable:$true] %s366
      %369 = dma.vmem_to_hbm [thread:$0]  %s365, 32, %s367, [#allocation4]
    $region65: #{tpu_custom_call.1} parent=1 // pred_fallthru
      _
    // Predicated region
    $region66: #{tpu_custom_call.1} parent=1 // pred_check
      _
    $region67: #{tpu_custom_call.1} parent=1 // pred_check_branch
      %371 = sbr.rel (0) target = $region69
    $region68: #{tpu_custom_call.1} parent=1 // pred_region
      %373 = dma.done [#allocation4], 32
    $region69: #{tpu_custom_call.1} parent=1 // pred_fallthru
      _
    %374 = vsyncpa [#allocation3], 1
    %375 = vsyncpa [#allocation6], 1
    %376 = vsyncpa [#allocation4], 1

</llo_original>
